<compile_context>
chip_gen: v5e
topology: v5e:2x2
jax: 0.10.0
libtpu: 0.0.40
codegen_flags: <defaults>
</compile_context>

<pallas_src>
import jax
import jax.numpy as jnp
from jax.experimental import pallas as pl
from jax.experimental.pallas import tpu as pltpu


def _round_up(n: int, m: int) -> int:
    return ((n + m - 1) // m) * m


def _vmem_capacity_bytes() -> int:
    """Generation-aware VMEM capacity; conservative fallback = v7x per-TC."""
    try:
        cap = getattr(pltpu.get_tpu_info(), "vmem_capacity_bytes", None)
        if cap:
            return int(cap)
    except Exception:
        pass
    return 64 * 1024 * 1024


def _logreg_kernel(x_ref, w_ref, b_ref, o_ref):
    # Upcast in-register: the HBM stream stays in X's native dtype, the math
    # runs in f32 (required on v5e, harmless elsewhere).
    x = x_ref[...].astype(jnp.float32)               # (TB, D) streamed tile
    w = w_ref[...].astype(jnp.float32)               # (1, D) resident
    # VPU multiply + XLU lane reduction instead of an N=1 MXU matmul.
    z = jnp.sum(x * w, axis=-1, keepdims=True)       # (TB, 1) f32
    z = z + b_ref[0]                                 # scalar bias from SMEM
    # Exact sigmoid; the kernel is HBM-bandwidth bound so the divide is hidden.
    o_ref[...] = (1.0 / (1.0 + jnp.exp(-z))).astype(o_ref.dtype)


def logistic_regression(x, w, b):
    """x: (B, D), w: (1, D) or (D,), b: (1,) or () -> (B, 1) f32 == sigmoid(x @ w.T + b)."""
    B, D = x.shape
    w = jnp.asarray(w).reshape(1, D)
    b1 = jnp.asarray(b, dtype=jnp.float32).reshape(1)

    # ---- tile sizing (bytes, lane-padding aware, generation aware) ----
    d_pad = _round_up(D, 128)                       # lane padding inside VMEM
    x_row = d_pad * x.dtype.itemsize                # physical X bytes per row
    o_row = 128 * 4                                 # (tb,1) f32 block pads to 128 lanes
    w_buf = 2 * 8 * d_pad * w.dtype.itemsize        # W: double-buffered, sublane-padded

    vmem_cap = _vmem_capacity_bytes()
    # ~48 MiB scoped on v7x (64 MiB physical), 64 MiB on v5e/v6e (128 MiB physical).
    vmem_limit = int(min(vmem_cap * 3 // 4, 64 * 1024 * 1024))
    slack = 4 * 1024 * 1024                         # headroom for compiler scratch

    budget = max(0, vmem_limit - w_buf - slack)
    per_row = 2 * (x_row + o_row)                   # double-buffered X + out, per row
    tb_budget = max(8, (budget // per_row) // 8 * 8)
    tb_cap = max(8, ((8 * 1024 * 1024) // x_row) // 8 * 8)   # ~8 MiB per X buffer
    tb = min(tb_budget, tb_cap, max(8, _round_up(B, 8)))

    # Prefer >=8 (else 4 / 2) grid steps so the two v7x TensorCores both get
    # work and DMA overlaps compute — but never shrink a tile below ~1 MiB of
    # X, where the ~0.35 us per-step overhead starts to dominate.
    tb_floor = max(8, ((1 * 1024 * 1024) // x_row) // 8 * 8)
    for steps in (8, 4, 2):
        cand = max(8, _round_up(pl.cdiv(B, steps), 8))
        if cand >= tb_floor:
            tb = min(tb, cand)
            break

    grid = (pl.cdiv(B, tb),)                        # ragged tail handled by masking

    return pl.pallas_call(
        _logreg_kernel,
        out_shape=jax.ShapeDtypeStruct((B, 1), jnp.float32),
        grid=grid,
        in_specs=[
            pl.BlockSpec((tb, D), lambda i: (i, 0)),            # X: streamed tiles
            pl.BlockSpec((1, D), lambda i: (0, 0)),             # W: resident block
            pl.BlockSpec(memory_space=pltpu.MemorySpace.SMEM),  # bias scalar
        ],
        out_specs=pl.BlockSpec((tb, 1), lambda i: (i, 0)),
        compiler_params=pltpu.CompilerParams(
            dimension_semantics=("parallel",),      # shard batch over v7x's 2 TCs
            vmem_limit_bytes=vmem_limit,
        ),
    )(x, w, b1)


if __name__ == "__main__":
    # Small shapes consistent with the module: batch=8, features=32.
    # NOTE: this shape is launch-overhead bound; benchmark with production
    # batch sizes (tens of thousands of rows) and an xprof trace, not here.
    B, D = 8, 32
    key = jax.random.PRNGKey(0)
    kx, kw, kb = jax.random.split(key, 3)

    # Deterministic parameter init mimicking nn.Linear: U(-1/sqrt(D), 1/sqrt(D)).
    bound = 1.0 / (D ** 0.5)
    x = jax.random.normal(kx, (B, D), dtype=jnp.float32)
    w = jax.random.uniform(kw, (1, D), minval=-bound, maxval=bound, dtype=jnp.float32)
    b = jax.random.uniform(kb, (1,), minval=-bound, maxval=bound, dtype=jnp.float32)

    out = logistic_regression(x, w, b)
    jax.block_until_ready(out)

    # Reference check in plain JAX.
    ref = jax.nn.sigmoid(x @ w.T + b)
    assert out.shape == (B, 1)
    assert jnp.allclose(out, ref, atol=1e-5), "mismatch vs reference"

    print("KERNEL_OK")
</pallas_src>

<mosaic_0001>
module attributes {stable_mosaic.version = 11 : i64} {
  func.func @_logreg_kernel(%arg0: i32, %arg1: memref<8x32xf32, #tpu.memory_space<vmem>>, %arg2: memref<1x32xf32, #tpu.memory_space<vmem>>, %arg3: memref<1xf32, #tpu.memory_space<smem>>, %arg4: memref<8x1xf32, #tpu.memory_space<vmem>>) attributes {dimension_semantics = [#tpu.dimension_semantics<parallel>], iteration_bounds = array<i64: 1>, scalar_prefetch = 0 : i64, scratch_operands = 0 : i64, tpu.core_type = #tpu.core_type<tc>, window_params = [{transform_indices = @transform_0, window_bounds = array<i64: 8, 32>}, {pipeline_mode = #tpu.pipeline_mode<synchronous>, transform_indices = @transform_1, window_bounds = array<i64: 1, 32>}, {transform_indices = @transform_2, window_bounds = array<i64: 1>}, {transform_indices = @transform_3, window_bounds = array<i64: 8, 1>}]} {
    %c0 = arith.constant 0 : index
    %c0_0 = arith.constant 0 : index
    %0 = vector.load %arg1[%c0, %c0_0] : memref<8x32xf32, #tpu.memory_space<vmem>>, vector<8x32xf32>
    %c0_1 = arith.constant 0 : index
    %c0_2 = arith.constant 0 : index
    %1 = vector.load %arg2[%c0_1, %c0_2] : memref<1x32xf32, #tpu.memory_space<vmem>>, vector<1x32xf32>
    %2 = vector.broadcast %1 : vector<1x32xf32> to vector<8x32xf32>
    %3 = arith.mulf %0, %2 : vector<8x32xf32>
    %cst = arith.constant dense<0.000000e+00> : vector<8xf32>
    %4 = vector.multi_reduction <add>, %3, %cst [1] : vector<8x32xf32> to vector<8xf32>
    %5 = vector.shape_cast %4 : vector<8xf32> to vector<8x1xf32>
    %c0_3 = arith.constant 0 : index
    %6 = memref.load %arg3[%c0_3] : memref<1xf32, #tpu.memory_space<smem>>
    %7 = vector.broadcast %6 : f32 to vector<8x1xf32>
    %8 = arith.addf %5, %7 : vector<8x1xf32>
    %cst_4 = arith.constant 0.000000e+00 : f32
    %9 = vector.broadcast %cst_4 : f32 to vector<8x1xf32>
    %10 = arith.subf %9, %8 : vector<8x1xf32>
    %11 = math.exp %10 : vector<8x1xf32>
    %cst_5 = arith.constant 1.000000e+00 : f32
    %12 = vector.broadcast %cst_5 : f32 to vector<8x1xf32>
    %13 = arith.addf %12, %11 : vector<8x1xf32>
    %cst_6 = arith.constant 1.000000e+00 : f32
    %14 = vector.broadcast %cst_6 : f32 to vector<8x1xf32>
    %15 = arith.divf %14, %13 : vector<8x1xf32>
    %c0_7 = arith.constant 0 : index
    %c0_8 = arith.constant 0 : index
    %16 = vector.load %arg4[%c0_7, %c0_8] : memref<8x1xf32, #tpu.memory_space<vmem>>, vector<8x1xf32>
    tpu.vector_store %arg4[%c0_7, %c0_8], %15 {strides = array<i32>} : memref<8x1xf32, #tpu.memory_space<vmem>>, vector<8x1xf32>,
    return
  }
  func.func @transform_0(%arg0: i32) -> (i32, i32) {
    %c0_i32 = arith.constant 0 : i32
    %c0_i32_0 = arith.constant 0 : i32
    return %arg0, %c0_i32 : i32, i32
  }
  func.func @transform_1(%arg0: i32) -> (i32, i32) {
    %c0_i32 = arith.constant 0 : i32
    %c0_i32_0 = arith.constant 0 : i32
    %c0_i32_1 = arith.constant 0 : i32
    return %c0_i32, %c0_i32_0 : i32, i32
  }
  func.func @transform_2(%arg0: i32) -> i32 {
    %c0_i32 = arith.constant 0 : i32
    %c0_i32_0 = arith.constant 0 : i32
    return %c0_i32 : i32
  }
  func.func @transform_3(%arg0: i32) -> (i32, i32) {
    %c0_i32 = arith.constant 0 : i32
    %c0_i32_0 = arith.constant 0 : i32
    return %arg0, %c0_i32 : i32, i32
  }
}

</mosaic_0001>

<llo_original>
// kernel: tpu_custom_call.1
$region0: #{tpu_custom_call.1}
  #allocation0 [shape = 'u32[]', space=smem, size = 0x4, offset = 0x4, fixed_abs, tag = 'smem constant byte address 0x4 - core index']
  #allocation1 [shape = 'u32[72,128]{1,0:T(1,128)}', space=vmem, size = 0x9000, scoped, tag = 'internal scratch']
  #allocation2 [shape = 'f32[1]{0:T(128)S(6)}', space=smem, size = 0x200, scoped, tag = 'scoped memory for tpu_custom_call.1']
  %s0 = inlined_call_operand.hbm [shape: f32[8,32], index: 0, kind: input, shape index: {}]
  %s1 = inlined_call_operand.vmem [shape: f32[1,32], index: 1, kind: input, shape index: {}]
  %s2 = inlined_call_operand.<no memory space> [shape: f32[1], index: 2, kind: input, shape index: {}]
  %s3 = inlined_call_operand.vmem [shape: f32[8,1], index: 3, kind: output, shape index: {}]
  %s4 = sld [smem:[#allocation0]]
  $region26: #{tpu_custom_call.1} parent=0
    _
  %s6 = ssub.s32 1, %s4
  %s7 = scalar_select 0, %s6, %s4
  %8 = sst [smem:[#allocation2]] %s2
  $region1: #{tpu_custom_call.1} parent=0
    #allocation3 [shape = 'u8[4096]{0}', space=vmem, size = 0x1000, scoped, tag = 'input window, operand 0, single buffered']
    #allocation4 [shape = 's32[1]{0}', space=sflag, size = 0x4, scoped, tag = 'scoped memory for tpu_custom_call.1']
    %9 = vsyncpa [#allocation4], 0
    // Predicated region
    $region2: #{tpu_custom_call.1} parent=1 // pred_check
      _
    $region3: #{tpu_custom_call.1} parent=1 // pred_check_branch
      %11 = sbr.rel (0) target = $region5
    $region4: #{tpu_custom_call.1} parent=1 // pred_region
      %13 = vsyncadd [#allocation4], 0
      %s15 = sshll.u32 %s0, 4
      %s16 = int_to_ptr.hbm [resolvable:$true] %s15
      %s17 = sshll.u32 [#allocation3], 4
      %s18 = int_to_ptr.vmem [resolvable:$true] %s17
      %20 = dma.hbm_to_vmem [thread:$0]  %s16, 128, %s18, [#allocation4]
    $region5: #{tpu_custom_call.1} parent=1 // pred_fallthru
      _
    // Predicated region
    $region6: #{tpu_custom_call.1} parent=1 // pred_check
      _
    $region7: #{tpu_custom_call.1} parent=1 // pred_check_branch
      %22 = sbr.rel (0) target = $region9
    $region8: #{tpu_custom_call.1} parent=1 // pred_region
      _
    $region9: #{tpu_custom_call.1} parent=1 // pred_fallthru
      _
    // Predicated region
    $region10: #{tpu_custom_call.1} parent=1 // pred_check
      _
    $region11: #{tpu_custom_call.1} parent=1 // pred_check_branch
      %24 = sbr.rel (0) target = $region13
    $region12: #{tpu_custom_call.1} parent=1 // pred_region
      _
    $region13: #{tpu_custom_call.1} parent=1 // pred_fallthru
      _
    // Predicated region
    $region14: #{tpu_custom_call.1} parent=1 // pred_check
      _
    $region15: #{tpu_custom_call.1} parent=1 // pred_check_branch
      %26 = sbr.rel (0) target = $region17
    $region16: #{tpu_custom_call.1} parent=1 // pred_region
      %28 = dma.done [#allocation4], 128
    $region17: #{tpu_custom_call.1} parent=1 // pred_fallthru
      _
    %v29 = vld [vmem:[#allocation3] sm:$0xff]
    %v30 = vld [vmem:[%s1] sm:$0x1]
    %v32 = vperm.slane %v30, 0
    %v34 = vmul.f32 %v29, %v32
    %vm35 = vcmask 261120
    %v36 = vsel %vm35, %v34, 0.0
    %37 = vadd.xlane.f32.xlu0 %v36
    %v38 = vpop.xlane.xlu0 %37
    %s39 = sld [smem:[#allocation2]]
    %v40 = vstv %s39
    %v41 = vadd.f32 %v38, %v40
    %v42 = vsub.f32 0.0, %v41
    %v43 = vmul.f32 %v42, 1.442695
    %v44 = vpow.pop %v43
    %v45 = vadd.f32 %v44, 1.0
    %v46 = vrcp.pop %v45
    %v47 = vmul.f32 %v45, %v46
    %v48 = vsub.f32 1.0, %v47
    %v49 = vmul.f32 %v46, %v48
    %v50 = vadd.f32 %v46, %v49
    %vm51 = vweird.f32 %v45
    %vm52 = vweird.f32 %v46
    %vm53 = vmor %vm51, %vm52
    %v54 = vsel %vm53, %v46, %v50
    %v55 = vand.u32 2147483647, %v45
    %vm56 = vcmp.eq.f32.partialorder %v55, 8.507059e+37
    %v57 = vand.u32 %v45, 2147483648
    %v58 = vor.u32 1.1754944e-38, %v57
    %v59 = vsel %vm56, %v58, %v54
    %v60 = vmul.f32 1.0, %v59
    %vm61 = vcmask 7168
    %62 = vst.msk [vmem:[%s3] sm:$0xff] %vm61, %v60
    // Predicated region
    $region18: #{tpu_custom_call.1} parent=1 // pred_check
      _
    $region19: #{tpu_custom_call.1} parent=1 // pred_check_branch
      %64 = sbr.rel (0) target = $region21
    $region20: #{tpu_custom_call.1} parent=1 // pred_region
      _
    $region21: #{tpu_custom_call.1} parent=1 // pred_fallthru
      _
    // Predicated region
    $region22: #{tpu_custom_call.1} parent=1 // pred_check
      _
    $region23: #{tpu_custom_call.1} parent=1 // pred_check_branch
      %66 = sbr.rel (0) target = $region25
    $region24: #{tpu_custom_call.1} parent=1 // pred_region
      _
    $region25: #{tpu_custom_call.1} parent=1 // pred_fallthru
      _
    %67 = vsyncpa [#allocation4], 1

</llo_original>
